<compile_context>
chip_gen: v7x
topology: tpu7x:2x2x1
jax: 0.10.0
libtpu: 0.0.40
codegen_flags: <defaults>
</compile_context>

<pallas_src>
import jax
import jax.numpy as jnp
from jax.experimental import pallas as pl
from jax.experimental.pallas import tpu as pltpu

EPS = 1e-5
LANE = 128


def _emotion_kernel(x_ref, w1_ref, b1_ref, w2_ref, b2_ref,
                    w3_ref, b3_ref, w4_ref, b4_ref, o_ref):
    # fc1 (BN folded) + ReLU        (TB, 1280) @ (1280, 128)
    h = jnp.dot(x_ref[...], w1_ref[...], preferred_element_type=jnp.float32)
    h = jnp.maximum(h + b1_ref[...], 0.0)
    # fc2 (BN folded) + ReLU        (TB, 128) @ (128, 64)
    h = jnp.dot(h, w2_ref[...], preferred_element_type=jnp.float32)
    h = jnp.maximum(h + b2_ref[...], 0.0)
    # fc3 + ReLU                    (TB, 64) @ (64, 32)
    h = jnp.dot(h, w3_ref[...], preferred_element_type=jnp.float32)
    h = jnp.maximum(h + b3_ref[...], 0.0)
    # fc4 (zero-padded to 128 lanes)  (TB, 32) @ (32, 128)
    o_ref[...] = jnp.dot(h, w4_ref[...], preferred_element_type=jnp.float32) + b4_ref[...]
    # TODO(synk): Dropout(0.3) is identity in eval mode; training-mode dropout not implemented.


def _fold_bn(w, b, gamma, beta, mean, var):
    """Fold eval-mode BatchNorm into the preceding Linear: y = (xW + b') * 1 form."""
    scale = gamma * jax.lax.rsqrt(var + EPS)          # (1, N)
    w_f = w * scale                                    # (K, N) * (1, N)
    b_f = (b - mean) * scale + beta                    # (1, N)
    return w_f, b_f


def emotion_classifier_forward(x, params, *, block_rows=1024):
    """x: (B, 5, 256) float32.  Returns logits (B, 11)."""
    B = x.shape[0]
    x_flat = x.reshape(B, -1).astype(jnp.float32)      # (B, 1280), like torch reshape
    in_dim = x_flat.shape[1]

    (w1, b1, g1, be1, m1, v1,
     w2, b2, g2, be2, m2, v2,
     w3, b3, w4, b4) = params

    # Host-side weight preparation: fold BN, pad final layer to 128 lanes.
    w1f, b1f = _fold_bn(w1, b1, g1, be1, m1, v1)       # (1280,128), (1,128)
    w2f, b2f = _fold_bn(w2, b2, g2, be2, m2, v2)       # (128,64),  (1,64)
    out_dim = w4.shape[1]
    out_pad = ((out_dim + LANE - 1) // LANE) * LANE    # 11 -> 128
    w4p = jnp.zeros((w4.shape[0], out_pad), jnp.float32).at[:, :out_dim].set(w4)
    b4p = jnp.zeros((1, out_pad), jnp.float32).at[:, :out_dim].set(b4)

    # Batch tiling: round B up to a sublane multiple, tile at <= block_rows.
    b_pad8 = max(8, ((B + 7) // 8) * 8)
    TB = min(block_rows, b_pad8)
    n_tiles = pl.cdiv(b_pad8, TB)
    B_pad = n_tiles * TB
    if B_pad != B:
        x_flat = jnp.zeros((B_pad, in_dim), jnp.float32).at[:B].set(x_flat)

    # Weights stay resident across the batch grid (index_map -> (0, 0)).
    resident = lambda a: pl.BlockSpec(a.shape, lambda i: (0,) * a.ndim)
    weights = (w1f, b1f, w2f, b2f, w3, b3, w4p, b4p)

    fn = pl.pallas_call(
        _emotion_kernel,
        out_shape=jax.ShapeDtypeStruct((B_pad, out_pad), jnp.float32),
        grid=(n_tiles,),
        in_specs=[pl.BlockSpec((TB, in_dim), lambda i: (i, 0))]
                 + [resident(a) for a in weights],
        out_specs=pl.BlockSpec((TB, out_pad), lambda i: (i, 0)),
        compiler_params=pltpu.CompilerParams(
            dimension_semantics=("parallel",),     # megacore split on v7x, harmless elsewhere
            vmem_limit_bytes=32 << 20,             # fits v7x's 64 MiB VMEM with headroom
        ),
    )
    out = fn(x_flat, *weights)
    return out[:B, :out_dim]


def init_params(key, input_dim=(5, 256), output_dim=11):
    """Deterministic synthetic parameters (shapes match the torch module)."""
    in_size = input_dim[0] * input_dim[1]
    dims = [in_size, 128, 64, 32, output_dim]
    keys = jax.random.split(key, 8)

    def lin(k, fan_in, fan_out):
        bound = 1.0 / jnp.sqrt(fan_in)
        kw, kb = jax.random.split(k)
        w = jax.random.uniform(kw, (fan_in, fan_out), jnp.float32, -bound, bound)
        b = jax.random.uniform(kb, (1, fan_out), jnp.float32, -bound, bound)
        return w, b

    w1, b1 = lin(keys[0], dims[0], dims[1])
    w2, b2 = lin(keys[1], dims[1], dims[2])
    w3, b3 = lin(keys[2], dims[2], dims[3])
    w4, b4 = lin(keys[3], dims[3], dims[4])

    # BatchNorm1d eval-mode params: gamma, beta, running_mean, running_var.
    def bn(k, n):
        kg, kb2, km, kv = jax.random.split(k, 4)
        gamma = 1.0 + 0.1 * jax.random.normal(kg, (1, n), jnp.float32)
        beta = 0.1 * jax.random.normal(kb2, (1, n), jnp.float32)
        mean = 0.05 * jax.random.normal(km, (1, n), jnp.float32)
        var = 1.0 + 0.1 * jax.random.uniform(kv, (1, n), jnp.float32)
        return gamma, beta, mean, var

    g1, be1, m1, v1 = bn(keys[4], dims[1])
    g2, be2, m2, v2 = bn(keys[5], dims[2])

    return (w1, b1, g1, be1, m1, v1,
            w2, b2, g2, be2, m2, v2,
            w3, b3, w4, b4)


def reference_forward(x, params):
    """Pure-JAX reference mirroring the PyTorch eval-mode forward (unfolded BN)."""
    (w1, b1, g1, be1, m1, v1,
     w2, b2, g2, be2, m2, v2,
     w3, b3, w4, b4) = params
    h = x.reshape(x.shape[0], -1)
    h = h @ w1 + b1
    h = g1 * (h - m1) / jnp.sqrt(v1 + EPS) + be1
    h = jnp.maximum(h, 0.0)
    h = h @ w2 + b2
    h = g2 * (h - m2) / jnp.sqrt(v2 + EPS) + be2
    h = jnp.maximum(h, 0.0)
    h = jnp.maximum(h @ w3 + b3, 0.0)
    return h @ w4 + b4


if __name__ == "__main__":
    key = jax.random.PRNGKey(0)
    k_params, k_x = jax.random.split(key)

    B = 8  # small demo batch (sublane-aligned); kernel also handles ragged B via padding
    params = init_params(k_params, input_dim=(5, 256), output_dim=11)
    x = jax.random.normal(k_x, (B, 5, 256), jnp.float32)

    out = emotion_classifier_forward(x, params)
    out = jax.block_until_ready(out)

    ref = reference_forward(x, params)
    assert out.shape == (B, 11), out.shape
    assert jnp.allclose(out, ref, atol=1e-4, rtol=1e-4), (
        float(jnp.max(jnp.abs(out - ref))))

    print("KERNEL_OK")
</pallas_src>

<mosaic_0001>
module attributes {stable_mosaic.version = 11 : i64} {
  func.func @_emotion_kernel(%arg0: i32, %arg1: memref<8x1280xf32, #tpu.memory_space<vmem>>, %arg2: memref<1280x128xf32, #tpu.memory_space<vmem>>, %arg3: memref<1x128xf32, #tpu.memory_space<vmem>>, %arg4: memref<128x64xf32, #tpu.memory_space<vmem>>, %arg5: memref<1x64xf32, #tpu.memory_space<vmem>>, %arg6: memref<64x32xf32, #tpu.memory_space<vmem>>, %arg7: memref<1x32xf32, #tpu.memory_space<vmem>>, %arg8: memref<32x128xf32, #tpu.memory_space<vmem>>, %arg9: memref<1x128xf32, #tpu.memory_space<vmem>>, %arg10: memref<8x128xf32, #tpu.memory_space<vmem>>) attributes {dimension_semantics = [#tpu.dimension_semantics<parallel>], iteration_bounds = array<i64: 1>, scalar_prefetch = 0 : i64, scratch_operands = 0 : i64, tpu.core_type = #tpu.core_type<tc>, window_params = [{transform_indices = @transform_0, window_bounds = array<i64: 8, 1280>}, {pipeline_mode = #tpu.pipeline_mode<synchronous>, transform_indices = @transform_1, window_bounds = array<i64: 1280, 128>}, {pipeline_mode = #tpu.pipeline_mode<synchronous>, transform_indices = @transform_2, window_bounds = array<i64: 1, 128>}, {pipeline_mode = #tpu.pipeline_mode<synchronous>, transform_indices = @transform_3, window_bounds = array<i64: 128, 64>}, {pipeline_mode = #tpu.pipeline_mode<synchronous>, transform_indices = @transform_4, window_bounds = array<i64: 1, 64>}, {pipeline_mode = #tpu.pipeline_mode<synchronous>, transform_indices = @transform_5, window_bounds = array<i64: 64, 32>}, {pipeline_mode = #tpu.pipeline_mode<synchronous>, transform_indices = @transform_6, window_bounds = array<i64: 1, 32>}, {pipeline_mode = #tpu.pipeline_mode<synchronous>, transform_indices = @transform_7, window_bounds = array<i64: 32, 128>}, {pipeline_mode = #tpu.pipeline_mode<synchronous>, transform_indices = @transform_8, window_bounds = array<i64: 1, 128>}, {transform_indices = @transform_9, window_bounds = array<i64: 8, 128>}]} {
    %c0 = arith.constant 0 : index
    %c0_0 = arith.constant 0 : index
    %0 = vector.load %arg1[%c0, %c0_0] : memref<8x1280xf32, #tpu.memory_space<vmem>>, vector<8x1280xf32>
    %c0_1 = arith.constant 0 : index
    %c0_2 = arith.constant 0 : index
    %1 = vector.load %arg2[%c0_1, %c0_2] : memref<1280x128xf32, #tpu.memory_space<vmem>>, vector<1280x128xf32>
    %cst = arith.constant dense<0.000000e+00> : vector<8x128xf32>
    %2 = tpu.matmul %0, %1, %cst {dimension_numbers = #tpu.dot_dimension_numbers<[1], [0], [0], [1], [0, 0, 1, 1], [], []>} : vector<8x1280xf32>, vector<1280x128xf32>, vector<8x128xf32> -> vector<8x128xf32>
    %c0_3 = arith.constant 0 : index
    %c0_4 = arith.constant 0 : index
    %3 = vector.load %arg3[%c0_3, %c0_4] : memref<1x128xf32, #tpu.memory_space<vmem>>, vector<1x128xf32>
    %4 = vector.broadcast %3 : vector<1x128xf32> to vector<8x128xf32>
    %5 = arith.addf %2, %4 : vector<8x128xf32>
    %cst_5 = arith.constant 0.000000e+00 : f32
    %6 = vector.broadcast %cst_5 : f32 to vector<8x128xf32>
    %7 = arith.maximumf %5, %6 : vector<8x128xf32>
    %c0_6 = arith.constant 0 : index
    %c0_7 = arith.constant 0 : index
    %8 = vector.load %arg4[%c0_6, %c0_7] : memref<128x64xf32, #tpu.memory_space<vmem>>, vector<128x64xf32>
    %cst_8 = arith.constant dense<0.000000e+00> : vector<8x64xf32>
    %9 = tpu.matmul %7, %8, %cst_8 {dimension_numbers = #tpu.dot_dimension_numbers<[1], [0], [0], [1], [0, 0, 1, 1], [], []>} : vector<8x128xf32>, vector<128x64xf32>, vector<8x64xf32> -> vector<8x64xf32>
    %c0_9 = arith.constant 0 : index
    %c0_10 = arith.constant 0 : index
    %10 = vector.load %arg5[%c0_9, %c0_10] : memref<1x64xf32, #tpu.memory_space<vmem>>, vector<1x64xf32>
    %11 = vector.broadcast %10 : vector<1x64xf32> to vector<8x64xf32>
    %12 = arith.addf %9, %11 : vector<8x64xf32>
    %cst_11 = arith.constant 0.000000e+00 : f32
    %13 = vector.broadcast %cst_11 : f32 to vector<8x64xf32>
    %14 = arith.maximumf %12, %13 : vector<8x64xf32>
    %c0_12 = arith.constant 0 : index
    %c0_13 = arith.constant 0 : index
    %15 = vector.load %arg6[%c0_12, %c0_13] : memref<64x32xf32, #tpu.memory_space<vmem>>, vector<64x32xf32>
    %cst_14 = arith.constant dense<0.000000e+00> : vector<8x32xf32>
    %16 = tpu.matmul %14, %15, %cst_14 {dimension_numbers = #tpu.dot_dimension_numbers<[1], [0], [0], [1], [0, 0, 1, 1], [], []>} : vector<8x64xf32>, vector<64x32xf32>, vector<8x32xf32> -> vector<8x32xf32>
    %c0_15 = arith.constant 0 : index
    %c0_16 = arith.constant 0 : index
    %17 = vector.load %arg7[%c0_15, %c0_16] : memref<1x32xf32, #tpu.memory_space<vmem>>, vector<1x32xf32>
    %18 = vector.broadcast %17 : vector<1x32xf32> to vector<8x32xf32>
    %19 = arith.addf %16, %18 : vector<8x32xf32>
    %cst_17 = arith.constant 0.000000e+00 : f32
    %20 = vector.broadcast %cst_17 : f32 to vector<8x32xf32>
    %21 = arith.maximumf %19, %20 : vector<8x32xf32>
    %c0_18 = arith.constant 0 : index
    %c0_19 = arith.constant 0 : index
    %22 = vector.load %arg8[%c0_18, %c0_19] : memref<32x128xf32, #tpu.memory_space<vmem>>, vector<32x128xf32>
    %cst_20 = arith.constant dense<0.000000e+00> : vector<8x128xf32>
    %23 = tpu.matmul %21, %22, %cst_20 {dimension_numbers = #tpu.dot_dimension_numbers<[1], [0], [0], [1], [0, 0, 1, 1], [], []>} : vector<8x32xf32>, vector<32x128xf32>, vector<8x128xf32> -> vector<8x128xf32>
    %c0_21 = arith.constant 0 : index
    %c0_22 = arith.constant 0 : index
    %24 = vector.load %arg9[%c0_21, %c0_22] : memref<1x128xf32, #tpu.memory_space<vmem>>, vector<1x128xf32>
    %25 = vector.broadcast %24 : vector<1x128xf32> to vector<8x128xf32>
    %26 = arith.addf %23, %25 : vector<8x128xf32>
    %c0_23 = arith.constant 0 : index
    %c0_24 = arith.constant 0 : index
    %27 = vector.load %arg10[%c0_23, %c0_24] : memref<8x128xf32, #tpu.memory_space<vmem>>, vector<8x128xf32>
    tpu.vector_store %arg10[%c0_23, %c0_24], %26 {strides = array<i32>} : memref<8x128xf32, #tpu.memory_space<vmem>>, vector<8x128xf32>,
    return
  }
  func.func @transform_0(%arg0: i32) -> (i32, i32) {
    %c0_i32 = arith.constant 0 : i32
    %c0_i32_0 = arith.constant 0 : i32
    return %arg0, %c0_i32 : i32, i32
  }
  func.func @transform_1(%arg0: i32) -> (i32, i32) {
    %c0_i32 = arith.constant 0 : i32
    %c0_i32_0 = arith.constant 0 : i32
    %c0_i32_1 = arith.constant 0 : i32
    return %c0_i32, %c0_i32_0 : i32, i32
  }
  func.func @transform_2(%arg0: i32) -> (i32, i32) {
    %c0_i32 = arith.constant 0 : i32
    %c0_i32_0 = arith.constant 0 : i32
    %c0_i32_1 = arith.constant 0 : i32
    return %c0_i32, %c0_i32_0 : i32, i32
  }
  func.func @transform_3(%arg0: i32) -> (i32, i32) {
    %c0_i32 = arith.constant 0 : i32
    %c0_i32_0 = arith.constant 0 : i32
    %c0_i32_1 = arith.constant 0 : i32
    return %c0_i32, %c0_i32_0 : i32, i32
  }
  func.func @transform_4(%arg0: i32) -> (i32, i32) {
    %c0_i32 = arith.constant 0 : i32
    %c0_i32_0 = arith.constant 0 : i32
    %c0_i32_1 = arith.constant 0 : i32
    return %c0_i32, %c0_i32_0 : i32, i32
  }
  func.func @transform_5(%arg0: i32) -> (i32, i32) {
    %c0_i32 = arith.constant 0 : i32
    %c0_i32_0 = arith.constant 0 : i32
    %c0_i32_1 = arith.constant 0 : i32
    return %c0_i32, %c0_i32_0 : i32, i32
  }
  func.func @transform_6(%arg0: i32) -> (i32, i32) {
    %c0_i32 = arith.constant 0 : i32
    %c0_i32_0 = arith.constant 0 : i32
    %c0_i32_1 = arith.constant 0 : i32
    return %c0_i32, %c0_i32_0 : i32, i32
  }
  func.func @transform_7(%arg0: i32) -> (i32, i32) {
    %c0_i32 = arith.constant 0 : i32
    %c0_i32_0 = arith.constant 0 : i32
    %c0_i32_1 = arith.constant 0 : i32
    return %c0_i32, %c0_i32_0 : i32, i32
  }
  func.func @transform_8(%arg0: i32) -> (i32, i32) {
    %c0_i32 = arith.constant 0 : i32
    %c0_i32_0 = arith.constant 0 : i32
    %c0_i32_1 = arith.constant 0 : i32
    return %c0_i32, %c0_i32_0 : i32, i32
  }
  func.func @transform_9(%arg0: i32) -> (i32, i32) {
    %c0_i32 = arith.constant 0 : i32
    %c0_i32_0 = arith.constant 0 : i32
    return %arg0, %c0_i32 : i32, i32
  }
}

</mosaic_0001>

<llo_original>
// kernel: tpu_custom_call.1
$region0: #{tpu_custom_call.1}
  #allocation0 [shape = 'u32[]', space=smem, size = 0x4, offset = 0x4, fixed_abs, tag = 'smem constant byte address 0x4 - core index']
  #allocation1 [shape = 'u32[144,128]{1,0:T(1,128)}', space=vmem, size = 0x12000, scoped, tag = 'internal scratch']
  %s0 = inlined_call_operand.vmem [shape: f32[8,1280], index: 0, kind: input, shape index: {}]
  %s1 = inlined_call_operand.hbm [shape: f32[1280,128], index: 1, kind: input, shape index: {}]
  %s2 = inlined_call_operand.vmem [shape: f32[1,128], index: 2, kind: input, shape index: {}]
  %s3 = inlined_call_operand.vmem [shape: f32[128,64], index: 3, kind: input, shape index: {}]
  %s4 = inlined_call_operand.vmem [shape: f32[1,64], index: 4, kind: input, shape index: {}]
  %s5 = inlined_call_operand.vmem [shape: f32[64,32], index: 5, kind: input, shape index: {}]
  %s6 = inlined_call_operand.vmem [shape: f32[1,32], index: 6, kind: input, shape index: {}]
  %s7 = inlined_call_operand.vmem [shape: f32[32,128], index: 7, kind: input, shape index: {}]
  %s8 = inlined_call_operand.vmem [shape: f32[1,128], index: 8, kind: input, shape index: {}]
  %s9 = inlined_call_operand.hbm [shape: f32[8,128], index: 9, kind: output, shape index: {}]
  %s10 = sld [smem:[#allocation0]]
  $region50: #{tpu_custom_call.1} parent=0
    _
  %s12 = ssub.s32 1, %s10
  %s13 = scalar_select 0, %s12, %s10
  $region1: #{tpu_custom_call.1} parent=0
    #allocation2 [shape = 'u8[655360]{0}', space=vmem, size = 0xa0000, scoped, tag = 'input window, operand 1, single buffered']
    #allocation3 [shape = 's32[1]{0}', space=sflag, size = 0x4, scoped, tag = 'scoped memory for tpu_custom_call.1']
    #allocation4 [shape = 's32[1]{0}', space=sflag, size = 0x4, scoped, tag = 'scoped memory for tpu_custom_call.1']
    #allocation5 [shape = 'u8[4096]{0}', space=vmem, size = 0x1000, scoped, tag = 'output window, operand 0, single buffered']
    %14 = vsyncpa [#allocation3], 0
    %15 = vsyncpa [#allocation4], 0
    // Predicated region
    $region2: #{tpu_custom_call.1} parent=1 // pred_check
      _
    $region3: #{tpu_custom_call.1} parent=1 // pred_check_branch
      %17 = sbr.rel (0) target = $region5
    $region4: #{tpu_custom_call.1} parent=1 // pred_region
      _
    $region5: #{tpu_custom_call.1} parent=1 // pred_fallthru
      _
    // Predicated region
    $region6: #{tpu_custom_call.1} parent=1 // pred_check
      _
    $region7: #{tpu_custom_call.1} parent=1 // pred_check_branch
      %19 = sbr.rel (0) target = $region9
    $region8: #{tpu_custom_call.1} parent=1 // pred_region
      %s21 = ssub.s32 20480, 20480
      %22 = vsyncadd [#allocation3], %s21
      %s23 = sshll.u32 [#allocation2], 4
      %s24 = int_to_ptr.vmem [resolvable:$true] %s23
      %29 = dma.hbm_to_vmem [thread:$0]  %s1, 20480, %s24, [#allocation3], 128, 128, 8
    $region9: #{tpu_custom_call.1} parent=1 // pred_fallthru
      _
    // Predicated region
    $region10: #{tpu_custom_call.1} parent=1 // pred_check
      _
    $region11: #{tpu_custom_call.1} parent=1 // pred_check_branch
      %31 = sbr.rel (0) target = $region13
    $region12: #{tpu_custom_call.1} parent=1 // pred_region
      _
    $region13: #{tpu_custom_call.1} parent=1 // pred_fallthru
      _
    // Predicated region
    $region14: #{tpu_custom_call.1} parent=1 // pred_check
      _
    $region15: #{tpu_custom_call.1} parent=1 // pred_check_branch
      %33 = sbr.rel (0) target = $region17
    $region16: #{tpu_custom_call.1} parent=1 // pred_region
      _
    $region17: #{tpu_custom_call.1} parent=1 // pred_fallthru
      _
    // Predicated region
    $region18: #{tpu_custom_call.1} parent=1 // pred_check
      _
    $region19: #{tpu_custom_call.1} parent=1 // pred_check_branch
      %35 = sbr.rel (0) target = $region21
    $region20: #{tpu_custom_call.1} parent=1 // pred_region
      _
    $region21: #{tpu_custom_call.1} parent=1 // pred_fallthru
      _
    // Predicated region
    $region22: #{tpu_custom_call.1} parent=1 // pred_check
      _
    $region23: #{tpu_custom_call.1} parent=1 // pred_check_branch
      %37 = sbr.rel (0) target = $region25
    $region24: #{tpu_custom_call.1} parent=1 // pred_region
      _
    $region25: #{tpu_custom_call.1} parent=1 // pred_fallthru
      _
    // Predicated region
    $region26: #{tpu_custom_call.1} parent=1 // pred_check
      _
    $region27: #{tpu_custom_call.1} parent=1 // pred_check_branch
      %39 = sbr.rel (0) target = $region29
    $region28: #{tpu_custom_call.1} parent=1 // pred_region
      _
    $region29: #{tpu_custom_call.1} parent=1 // pred_fallthru
      _
    // Predicated region
    $region30: #{tpu_custom_call.1} parent=1 // pred_check
      _
    $region31: #{tpu_custom_call.1} parent=1 // pred_check_branch
      %41 = sbr.rel (0) target = $region33
    $region32: #{tpu_custom_call.1} parent=1 // pred_region
      _
    $region33: #{tpu_custom_call.1} parent=1 // pred_fallthru
      _
    // Predicated region
    $region34: #{tpu_custom_call.1} parent=1 // pred_check
      _
    $region35: #{tpu_custom_call.1} parent=1 // pred_check_branch
      %43 = sbr.rel (0) target = $region37
    $region36: #{tpu_custom_call.1} parent=1 // pred_region
      _
    $region37: #{tpu_custom_call.1} parent=1 // pred_fallthru
      _
    // Predicated region
    $region38: #{tpu_custom_call.1} parent=1 // pred_check
      _
    $region39: #{tpu_custom_call.1} parent=1 // pred_check_branch
      %45 = sbr.rel (0) target = $region41
    $region40: #{tpu_custom_call.1} parent=1 // pred_region
      %46 = dma.done [#allocation3], 20480
    $region41: #{tpu_custom_call.1} parent=1 // pred_fallthru
      _
    %v47 = vld [vmem:[%s0] sm:$0xff]
    %v48 = vld [vmem:[%s0 + $0x8] sm:$0xff]
    %v49 = vld [vmem:[%s0 + $0x10] sm:$0xff]
    %v50 = vld [vmem:[%s0 + $0x18] sm:$0xff]
    %v51 = vld [vmem:[%s0 + $0x20] sm:$0xff]
    %v52 = vld [vmem:[%s0 + $0x28] sm:$0xff]
    %v53 = vld [vmem:[%s0 + $0x30] sm:$0xff]
    %v54 = vld [vmem:[%s0 + $0x38] sm:$0xff]
    %v55 = vld [vmem:[%s0 + $0x40] sm:$0xff]
    %v56 = vld [vmem:[%s0 + $0x48] sm:$0xff]
    %v57 = vld [vmem:[#allocation2] sm:$0xff]
    %v58 = vld [vmem:[#allocation2 + $0x8] sm:$0xff]
    %v59 = vld [vmem:[#allocation2 + $0x10] sm:$0xff]
    %v60 = vld [vmem:[#allocation2 + $0x18] sm:$0xff]
    %v61 = vld [vmem:[#allocation2 + $0x20] sm:$0xff]
    %v62 = vld [vmem:[#allocation2 + $0x28] sm:$0xff]
    %v63 = vld [vmem:[#allocation2 + $0x30] sm:$0xff]
    %v64 = vld [vmem:[#allocation2 + $0x38] sm:$0xff]
    %v65 = vld [vmem:[#allocation2 + $0x40] sm:$0xff]
    %v66 = vld [vmem:[#allocation2 + $0x48] sm:$0xff]
    %v67 = vld [vmem:[#allocation2 + $0x50] sm:$0xff]
    %v68 = vld [vmem:[#allocation2 + $0x58] sm:$0xff]
    %v69 = vld [vmem:[#allocation2 + $0x60] sm:$0xff]
    %v70 = vld [vmem:[#allocation2 + $0x68] sm:$0xff]
    %v71 = vld [vmem:[#allocation2 + $0x70] sm:$0xff]
    %v72 = vld [vmem:[#allocation2 + $0x78] sm:$0xff]
    %v73 = vld [vmem:[#allocation2 + $0x80] sm:$0xff]
    %v74 = vld [vmem:[#allocation2 + $0x88] sm:$0xff]
    %v75 = vld [vmem:[#allocation2 + $0x90] sm:$0xff]
    %v76 = vld [vmem:[#allocation2 + $0x98] sm:$0xff]
    %v77 = vld [vmem:[#allocation2 + $0xa0] sm:$0xff]
    %v78 = vld [vmem:[#allocation2 + $0xa8] sm:$0xff]
    %v79 = vld [vmem:[#allocation2 + $0xb0] sm:$0xff]
    %v80 = vld [vmem:[#allocation2 + $0xb8] sm:$0xff]
    %v81 = vld [vmem:[#allocation2 + $0xc0] sm:$0xff]
    %v82 = vld [vmem:[#allocation2 + $0xc8] sm:$0xff]
    %v83 = vld [vmem:[#allocation2 + $0xd0] sm:$0xff]
    %v84 = vld [vmem:[#allocation2 + $0xd8] sm:$0xff]
    %v85 = vld [vmem:[#allocation2 + $0xe0] sm:$0xff]
    %v86 = vld [vmem:[#allocation2 + $0xe8] sm:$0xff]
    %v87 = vld [vmem:[#allocation2 + $0xf0] sm:$0xff]
    %v88 = vld [vmem:[#allocation2 + $0xf8] sm:$0xff]
    %v89 = vld [vmem:[#allocation2 + $0x100] sm:$0xff]
    %v90 = vld [vmem:[#allocation2 + $0x108] sm:$0xff]
    %v91 = vld [vmem:[#allocation2 + $0x110] sm:$0xff]
    %v92 = vld [vmem:[#allocation2 + $0x118] sm:$0xff]
    %v93 = vld [vmem:[#allocation2 + $0x120] sm:$0xff]
    %v94 = vld [vmem:[#allocation2 + $0x128] sm:$0xff]
    %v95 = vld [vmem:[#allocation2 + $0x130] sm:$0xff]
    %v96 = vld [vmem:[#allocation2 + $0x138] sm:$0xff]
    %v97 = vld [vmem:[#allocation2 + $0x140] sm:$0xff]
    %v98 = vld [vmem:[#allocation2 + $0x148] sm:$0xff]
    %v99 = vld [vmem:[#allocation2 + $0x150] sm:$0xff]
    %v100 = vld [vmem:[#allocation2 + $0x158] sm:$0xff]
    %v101 = vld [vmem:[#allocation2 + $0x160] sm:$0xff]
    %v102 = vld [vmem:[#allocation2 + $0x168] sm:$0xff]
    %v103 = vld [vmem:[#allocation2 + $0x170] sm:$0xff]
    %v104 = vld [vmem:[#allocation2 + $0x178] sm:$0xff]
    %v105 = vld [vmem:[#allocation2 + $0x180] sm:$0xff]
    %v106 = vld [vmem:[#allocation2 + $0x188] sm:$0xff]
    %v107 = vld [vmem:[#allocation2 + $0x190] sm:$0xff]
    %v108 = vld [vmem:[#allocation2 + $0x198] sm:$0xff]
    %v109 = vld [vmem:[#allocation2 + $0x1a0] sm:$0xff]
    %v110 = vld [vmem:[#allocation2 + $0x1a8] sm:$0xff]
    %v111 = vld [vmem:[#allocation2 + $0x1b0] sm:$0xff]
    %v112 = vld [vmem:[#allocation2 + $0x1b8] sm:$0xff]
    %v113 = vld [vmem:[#allocation2 + $0x1c0] sm:$0xff]
    %v114 = vld [vmem:[#allocation2 + $0x1c8] sm:$0xff]
    %v115 = vld [vmem:[#allocation2 + $0x1d0] sm:$0xff]
    %v116 = vld [vmem:[#allocation2 + $0x1d8] sm:$0xff]
    %v117 = vld [vmem:[#allocation2 + $0x1e0] sm:$0xff]
    %v118 = vld [vmem:[#allocation2 + $0x1e8] sm:$0xff]
    %v119 = vld [vmem:[#allocation2 + $0x1f0] sm:$0xff]
    %v120 = vld [vmem:[#allocation2 + $0x1f8] sm:$0xff]
    %v121 = vld [vmem:[#allocation2 + $0x200] sm:$0xff]
    %v122 = vld [vmem:[#allocation2 + $0x208] sm:$0xff]
    %v123 = vld [vmem:[#allocation2 + $0x210] sm:$0xff]
    %v124 = vld [vmem:[#allocation2 + $0x218] sm:$0xff]
    %v125 = vld [vmem:[#allocation2 + $0x220] sm:$0xff]
    %v126 = vld [vmem:[#allocation2 + $0x228] sm:$0xff]
    %v127 = vld [vmem:[#allocation2 + $0x230] sm:$0xff]
    %v128 = vld [vmem:[#allocation2 + $0x238] sm:$0xff]
    %v129 = vld [vmem:[#allocation2 + $0x240] sm:$0xff]
    %v130 = vld [vmem:[#allocation2 + $0x248] sm:$0xff]
    %v131 = vld [vmem:[#allocation2 + $0x250] sm:$0xff]
    %v132 = vld [vmem:[#allocation2 + $0x258] sm:$0xff]
    %v133 = vld [vmem:[#allocation2 + $0x260] sm:$0xff]
    %v134 = vld [vmem:[#allocation2 + $0x268] sm:$0xff]
    %v135 = vld [vmem:[#allocation2 + $0x270] sm:$0xff]
    %v136 = vld [vmem:[#allocation2 + $0x278] sm:$0xff]
    %v137 = vld [vmem:[#allocation2 + $0x280] sm:$0xff]
    %v138 = vld [vmem:[#allocation2 + $0x288] sm:$0xff]
    %v139 = vld [vmem:[#allocation2 + $0x290] sm:$0xff]
    %v140 = vld [vmem:[#allocation2 + $0x298] sm:$0xff]
    %v141 = vld [vmem:[#allocation2 + $0x2a0] sm:$0xff]
    %v142 = vld [vmem:[#allocation2 + $0x2a8] sm:$0xff]
    %v143 = vld [vmem:[#allocation2 + $0x2b0] sm:$0xff]
    %v144 = vld [vmem:[#allocation2 + $0x2b8] sm:$0xff]
    %v145 = vld [vmem:[#allocation2 + $0x2c0] sm:$0xff]
    %v146 = vld [vmem:[#allocation2 + $0x2c8] sm:$0xff]
    %v147 = vld [vmem:[#allocation2 + $0x2d0] sm:$0xff]
    %v148 = vld [vmem:[#allocation2 + $0x2d8] sm:$0xff]
    %v149 = vld [vmem:[#allocation2 + $0x2e0] sm:$0xff]
    %v150 = vld [vmem:[#allocation2 + $0x2e8] sm:$0xff]
    %v151 = vld [vmem:[#allocation2 + $0x2f0] sm:$0xff]
    %v152 = vld [vmem:[#allocation2 + $0x2f8] sm:$0xff]
    %v153 = vld [vmem:[#allocation2 + $0x300] sm:$0xff]
    %v154 = vld [vmem:[#allocation2 + $0x308] sm:$0xff]
    %v155 = vld [vmem:[#allocation2 + $0x310] sm:$0xff]
    %v156 = vld [vmem:[#allocation2 + $0x318] sm:$0xff]
    %v157 = vld [vmem:[#allocation2 + $0x320] sm:$0xff]
    %v158 = vld [vmem:[#allocation2 + $0x328] sm:$0xff]
    %v159 = vld [vmem:[#allocation2 + $0x330] sm:$0xff]
    %v160 = vld [vmem:[#allocation2 + $0x338] sm:$0xff]
    %v161 = vld [vmem:[#allocation2 + $0x340] sm:$0xff]
    %v162 = vld [vmem:[#allocation2 + $0x348] sm:$0xff]
    %v163 = vld [vmem:[#allocation2 + $0x350] sm:$0xff]
    %v164 = vld [vmem:[#allocation2 + $0x358] sm:$0xff]
    %v165 = vld [vmem:[#allocation2 + $0x360] sm:$0xff]
    %v166 = vld [vmem:[#allocation2 + $0x368] sm:$0xff]
    %v167 = vld [vmem:[#allocation2 + $0x370] sm:$0xff]
    %v168 = vld [vmem:[#allocation2 + $0x378] sm:$0xff]
    %v169 = vld [vmem:[#allocation2 + $0x380] sm:$0xff]
    %v170 = vld [vmem:[#allocation2 + $0x388] sm:$0xff]
    %v171 = vld [vmem:[#allocation2 + $0x390] sm:$0xff]
    %v172 = vld [vmem:[#allocation2 + $0x398] sm:$0xff]
    %v173 = vld [vmem:[#allocation2 + $0x3a0] sm:$0xff]
    %v174 = vld [vmem:[#allocation2 + $0x3a8] sm:$0xff]
    %v175 = vld [vmem:[#allocation2 + $0x3b0] sm:$0xff]
    %v176 = vld [vmem:[#allocation2 + $0x3b8] sm:$0xff]
    %v177 = vld [vmem:[#allocation2 + $0x3c0] sm:$0xff]
    %v178 = vld [vmem:[#allocation2 + $0x3c8] sm:$0xff]
    %v179 = vld [vmem:[#allocation2 + $0x3d0] sm:$0xff]
    %v180 = vld [vmem:[#allocation2 + $0x3d8] sm:$0xff]
    %v181 = vld [vmem:[#allocation2 + $0x3e0] sm:$0xff]
    %v182 = vld [vmem:[#allocation2 + $0x3e8] sm:$0xff]
    %v183 = vld [vmem:[#allocation2 + $0x3f0] sm:$0xff]
    %v184 = vld [vmem:[#allocation2 + $0x3f8] sm:$0xff]
    %v185 = vld [vmem:[#allocation2 + $0x400] sm:$0xff]
    %v186 = vld [vmem:[#allocation2 + $0x408] sm:$0xff]
    %v187 = vld [vmem:[#allocation2 + $0x410] sm:$0xff]
    %v188 = vld [vmem:[#allocation2 + $0x418] sm:$0xff]
    %v189 = vld [vmem:[#allocation2 + $0x420] sm:$0xff]
    %v190 = vld [vmem:[#allocation2 + $0x428] sm:$0xff]
    %v191 = vld [vmem:[#allocation2 + $0x430] sm:$0xff]
    %v192 = vld [vmem:[#allocation2 + $0x438] sm:$0xff]
    %v193 = vld [vmem:[#allocation2 + $0x440] sm:$0xff]
    %v194 = vld [vmem:[#allocation2 + $0x448] sm:$0xff]
    %v195 = vld [vmem:[#allocation2 + $0x450] sm:$0xff]
    %v196 = vld [vmem:[#allocation2 + $0x458] sm:$0xff]
    %v197 = vld [vmem:[#allocation2 + $0x460] sm:$0xff]
    %v198 = vld [vmem:[#allocation2 + $0x468] sm:$0xff]
    %v199 = vld [vmem:[#allocation2 + $0x470] sm:$0xff]
    %v200 = vld [vmem:[#allocation2 + $0x478] sm:$0xff]
    %v201 = vld [vmem:[#allocation2 + $0x480] sm:$0xff]
    %v202 = vld [vmem:[#allocation2 + $0x488] sm:$0xff]
    %v203 = vld [vmem:[#allocation2 + $0x490] sm:$0xff]
    %v204 = vld [vmem:[#allocation2 + $0x498] sm:$0xff]
    %v205 = vld [vmem:[#allocation2 + $0x4a0] sm:$0xff]
    %v206 = vld [vmem:[#allocation2 + $0x4a8] sm:$0xff]
    %v207 = vld [vmem:[#allocation2 + $0x4b0] sm:$0xff]
    %v208 = vld [vmem:[#allocation2 + $0x4b8] sm:$0xff]
    %v209 = vld [vmem:[#allocation2 + $0x4c0] sm:$0xff]
    %v210 = vld [vmem:[#allocation2 + $0x4c8] sm:$0xff]
    %v211 = vld [vmem:[#allocation2 + $0x4d0] sm:$0xff]
    %v212 = vld [vmem:[#allocation2 + $0x4d8] sm:$0xff]
    %v213 = vld [vmem:[#allocation2 + $0x4e0] sm:$0xff]
    %v214 = vld [vmem:[#allocation2 + $0x4e8] sm:$0xff]
    %v215 = vld [vmem:[#allocation2 + $0x4f0] sm:$0xff]
    %v216 = vld [vmem:[#allocation2 + $0x4f8] sm:$0xff]
    %v217 = vld [vmem:[%s2] sm:$0x1]
    %v219 = vlaneseq
    %v220 = vshrl.u32 %v219, 7
    %v221 = vsub.s32 0, %v220
    %v222 = vrot.slane %v217, %v221
    %224 = vmatprep.subr.mxu0 0.0
    %225 = vmatpush1.msra.mxu0 %v57
    %226 = vmatprep.subr.mxu0 0.0
    %227 = vmatpush1.msra.mxu0 %v58
    %228 = vmatprep.subr.mxu0 0.0
    %229 = vmatpush1.msra.mxu0 %v59
    %230 = vmatprep.subr.mxu0 0.0
    %231 = vmatpush1.msra.mxu0 %v60
    %232 = vmatprep.subr.mxu0 0.0
    %233 = vmatpush1.msra.mxu0 %v61
    %234 = vmatprep.subr.mxu0 0.0
    %235 = vmatpush1.msra.mxu0 %v62
    %236 = vmatprep.subr.mxu0 0.0
    %237 = vmatpush1.msra.mxu0 %v63
    %238 = vmatprep.subr.mxu0 0.0
    %239 = vmatpush1.msra.mxu0 %v64
    %240 = vmatprep.subr.mxu0 0.0
    %241 = vmatpush1.msra.mxu0 %v65
    %242 = vmatprep.subr.mxu0 0.0
    %243 = vmatpush1.msra.mxu0 %v66
    %244 = vmatprep.subr.mxu0 0.0
    %245 = vmatpush1.msra.mxu0 %v67
    %246 = vmatprep.subr.mxu0 0.0
    %247 = vmatpush1.msra.mxu0 %v68
    %248 = vmatprep.subr.mxu0 0.0
    %249 = vmatpush1.msra.mxu0 %v69
    %250 = vmatprep.subr.mxu0 0.0
    %251 = vmatpush1.msra.mxu0 %v70
    %252 = vmatprep.subr.mxu0 0.0
    %253 = vmatpush1.msra.mxu0 %v71
    %254 = vmatprep.subr.mxu0 0.0
    %255 = vmatpush1.msra.mxu0 %v72
    %256 = vmatprep.subr.mxu0 0.0
    %257 = vmatpush1.msra.mxu0 %v73
    %258 = vmatprep.subr.mxu0 0.0
    %259 = vmatpush1.msra.mxu0 %v74
    %260 = vmatprep.subr.mxu0 0.0
    %261 = vmatpush1.msra.mxu0 %v75
    %262 = vmatprep.subr.mxu0 0.0
    %263 = vmatpush1.msra.mxu0 %v76
    %264 = vmatprep.subr.mxu0 0.0
    %265 = vmatpush1.msra.mxu0 %v77
    %266 = vmatprep.subr.mxu0 0.0
    %267 = vmatpush1.msra.mxu0 %v78
    %268 = vmatprep.subr.mxu0 0.0
    %269 = vmatpush1.msra.mxu0 %v79
    %270 = vmatprep.subr.mxu0 0.0
    %271 = vmatpush1.msra.mxu0 %v80
    %272 = vmatprep.subr.mxu0 0.0
    %273 = vmatpush1.msra.mxu0 %v81
    %274 = vmatprep.subr.mxu0 0.0
    %275 = vmatpush1.msra.mxu0 %v82
    %276 = vmatprep.subr.mxu0 0.0
    %277 = vmatpush1.msra.mxu0 %v83
    %278 = vmatprep.subr.mxu0 0.0
    %279 = vmatpush1.msra.mxu0 %v84
    %280 = vmatprep.subr.mxu0 0.0
    %281 = vmatpush1.msra.mxu0 %v85
    %282 = vmatprep.subr.mxu0 0.0
    %283 = vmatpush1.msra.mxu0 %v86
    %284 = vmatprep.subr.mxu0 0.0
    %285 = vmatpush1.msra.mxu0 %v87
    %286 = vmatprep.subr.mxu0 0.0
    %287 = vmatpush1.msra.mxu0 %v88
    %288 = vmatprep.mubr.f32.mxu0 %v48
    %289 = vmatmul.mubr.f32.gmra.mrb[0].mxu0 %v47
    %v290 = vpop.f32.mrb[0].mxu0
    %v291 = vadd.f32 %v222, %v290
    %v292 = vpop.f32.mrb[0].mxu0
    %293 = vdwg.mxu0
    %294 = vmatprep.subr.mxu0 0.0
    %295 = vmatpush1.msra.mxu0 %v89
    %296 = vmatprep.subr.mxu0 0.0
    %297 = vmatpush1.msra.mxu0 %v90
    %298 = vmatprep.subr.mxu0 0.0
    %299 = vmatpush1.msra.mxu0 %v91
    %300 = vmatprep.subr.mxu0 0.0
    %301 = vmatpush1.msra.mxu0 %v92
    %302 = vmatprep.subr.mxu0 0.0
    %303 = vmatpush1.msra.mxu0 %v93
    %304 = vmatprep.subr.mxu0 0.0
    %305 = vmatpush1.msra.mxu0 %v94
    %306 = vmatprep.subr.mxu0 0.0
    %307 = vmatpush1.msra.mxu0 %v95
    %308 = vmatprep.subr.mxu0 0.0
    %309 = vmatpush1.msra.mxu0 %v96
    %310 = vmatprep.subr.mxu0 0.0
    %311 = vmatpush1.msra.mxu0 %v97
    %312 = vmatprep.subr.mxu0 0.0
    %313 = vmatpush1.msra.mxu0 %v98
    %314 = vmatprep.subr.mxu0 0.0
    %315 = vmatpush1.msra.mxu0 %v99
    %316 = vmatprep.subr.mxu0 0.0
    %317 = vmatpush1.msra.mxu0 %v100
    %318 = vmatprep.subr.mxu0 0.0
    %319 = vmatpush1.msra.mxu0 %v101
    %320 = vmatprep.subr.mxu0 0.0
    %321 = vmatpush1.msra.mxu0 %v102
    %322 = vmatprep.subr.mxu0 0.0
    %323 = vmatpush1.msra.mxu0 %v103
    %324 = vmatprep.subr.mxu0 0.0
    %325 = vmatpush1.msra.mxu0 %v104
    %326 = vmatprep.subr.mxu0 0.0
    %327 = vmatpush1.msra.mxu0 %v105
    %328 = vmatprep.subr.mxu0 0.0
    %329 = vmatpush1.msra.mxu0 %v106
    %330 = vmatprep.subr.mxu0 0.0
    %331 = vmatpush1.msra.mxu0 %v107
    %332 = vmatprep.subr.mxu0 0.0
    %333 = vmatpush1.msra.mxu0 %v108
    %334 = vmatprep.subr.mxu0 0.0
    %335 = vmatpush1.msra.mxu0 %v109
    %336 = vmatprep.subr.mxu0 0.0
    %337 = vmatpush1.msra.mxu0 %v110
    %338 = vmatprep.subr.mxu0 0.0
    %339 = vmatpush1.msra.mxu0 %v111
    %340 = vmatprep.subr.mxu0 0.0
    %341 = vmatpush1.msra.mxu0 %v112
    %342 = vmatprep.subr.mxu0 0.0
    %343 = vmatpush1.msra.mxu0 %v113
    %344 = vmatprep.subr.mxu0 0.0
    %345 = vmatpush1.msra.mxu0 %v114
    %346 = vmatprep.subr.mxu0 0.0
    %347 = vmatpush1.msra.mxu0 %v115
    %348 = vmatprep.subr.mxu0 0.0
    %349 = vmatpush1.msra.mxu0 %v116
    %350 = vmatprep.subr.mxu0 0.0
    %351 = vmatpush1.msra.mxu0 %v117
    %352 = vmatprep.subr.mxu0 0.0
    %353 = vmatpush1.msra.mxu0 %v118
    %354 = vmatprep.subr.mxu0 0.0
    %355 = vmatpush1.msra.mxu0 %v119
    %356 = vmatprep.subr.mxu0 0.0
    %357 = vmatpush1.msra.mxu0 %v120
    %358 = vmatprep.mubr.f32.mxu0 %v50
    %359 = vmatmul.mubr.f32.gmra.mrb[0].mxu0 %v49
    %v360 = vpop.f32.mrb[0].mxu0
    %v361 = vadd.f32 %v291, %v360
    %v362 = vpop.f32.mrb[0].mxu0
    %363 = vdwg.mxu0
    %364 = vmatprep.subr.mxu0 0.0
    %365 = vmatpush1.msra.mxu0 %v121
    %366 = vmatprep.subr.mxu0 0.0
    %367 = vmatpush1.msra.mxu0 %v122
    %368 = vmatprep.subr.mxu0 0.0
    %369 = vmatpush1.msra.mxu0 %v123
    %370 = vmatprep.subr.mxu0 0.0
    %371 = vmatpush1.msra.mxu0 %v124
    %372 = vmatprep.subr.mxu0 0.0
    %373 = vmatpush1.msra.mxu0 %v125
    %374 = vmatprep.subr.mxu0 0.0
    %375 = vmatpush1.msra.mxu0 %v126
    %376 = vmatprep.subr.mxu0 0.0
    %377 = vmatpush1.msra.mxu0 %v127
    %378 = vmatprep.subr.mxu0 0.0
    %379 = vmatpush1.msra.mxu0 %v128
    %380 = vmatprep.subr.mxu0 0.0
    %381 = vmatpush1.msra.mxu0 %v129
    %382 = vmatprep.subr.mxu0 0.0
    %383 = vmatpush1.msra.mxu0 %v130
    %384 = vmatprep.subr.mxu0 0.0
    %385 = vmatpush1.msra.mxu0 %v131
    %386 = vmatprep.subr.mxu0 0.0
    %387 = vmatpush1.msra.mxu0 %v132
    %388 = vmatprep.subr.mxu0 0.0
    %389 = vmatpush1.msra.mxu0 %v133
    %390 = vmatprep.subr.mxu0 0.0
    %391 = vmatpush1.msra.mxu0 %v134
    %392 = vmatprep.subr.mxu0 0.0
    %393 = vmatpush1.msra.mxu0 %v135
    %394 = vmatprep.subr.mxu0 0.0
    %395 = vmatpush1.msra.mxu0 %v136
    %396 = vmatprep.subr.mxu0 0.0
    %397 = vmatpush1.msra.mxu0 %v137
    %398 = vmatprep.subr.mxu0 0.0
    %399 = vmatpush1.msra.mxu0 %v138
    %400 = vmatprep.subr.mxu0 0.0
    %401 = vmatpush1.msra.mxu0 %v139
    %402 = vmatprep.subr.mxu0 0.0
    %403 = vmatpush1.msra.mxu0 %v140
    %404 = vmatprep.subr.mxu0 0.0
    %405 = vmatpush1.msra.mxu0 %v141
    %406 = vmatprep.subr.mxu0 0.0
    %407 = vmatpush1.msra.mxu0 %v142
    %408 = vmatprep.subr.mxu0 0.0
    %409 = vmatpush1.msra.mxu0 %v143
    %410 = vmatprep.subr.mxu0 0.0
    %411 = vmatpush1.msra.mxu0 %v144
    %412 = vmatprep.subr.mxu0 0.0
    %413 = vmatpush1.msra.mxu0 %v145
    %414 = vmatprep.subr.mxu0 0.0
    %415 = vmatpush1.msra.mxu0 %v146
    %416 = vmatprep.subr.mxu0 0.0
    %417 = vmatpush1.msra.mxu0 %v147
    %418 = vmatprep.subr.mxu0 0.0
    %419 = vmatpush1.msra.mxu0 %v148
    %420 = vmatprep.subr.mxu0 0.0
    %421 = vmatpush1.msra.mxu0 %v149
    %422 = vmatprep.subr.mxu0 0.0
    %423 = vmatpush1.msra.mxu0 %v150
    %424 = vmatprep.subr.mxu0 0.0
    %425 = vmatpush1.msra.mxu0 %v151
    %426 = vmatprep.subr.mxu0 0.0
    %427 = vmatpush1.msra.mxu0 %v152
    %428 = vmatprep.mubr.f32.mxu0 %v52
    %429 = vmatmul.mubr.f32.gmra.mrb[0].mxu0 %v51
    %v430 = vpop.f32.mrb[0].mxu0
    %v431 = vadd.f32 %v361, %v430
    %v432 = vpop.f32.mrb[0].mxu0
    %433 = vdwg.mxu0
    %434 = vmatprep.subr.mxu0 0.0
    %435 = vmatpush1.msra.mxu0 %v153
    %436 = vmatprep.subr.mxu0 0.0
    %437 = vmatpush1.msra.mxu0 %v154
    %438 = vmatprep.subr.mxu0 0.0
    %439 = vmatpush1.msra.mxu0 %v155
    %440 = vmatprep.subr.mxu0 0.0
    %441 = vmatpush1.msra.mxu0 %v156
    %442 = vmatprep.subr.mxu0 0.0
    %443 = vmatpush1.msra.mxu0 %v157
    %444 = vmatprep.subr.mxu0 0.0
    %445 = vmatpush1.msra.mxu0 %v158
    %446 = vmatprep.subr.mxu0 0.0
    %447 = vmatpush1.msra.mxu0 %v159
    %448 = vmatprep.subr.mxu0 0.0
    %449 = vmatpush1.msra.mxu0 %v160
    %450 = vmatprep.subr.mxu0 0.0
    %451 = vmatpush1.msra.mxu0 %v161
    %452 = vmatprep.subr.mxu0 0.0
    %453 = vmatpush1.msra.mxu0 %v162
    %454 = vmatprep.subr.mxu0 0.0
    %455 = vmatpush1.msra.mxu0 %v163
    %456 = vmatprep.subr.mxu0 0.0
    %457 = vmatpush1.msra.mxu0 %v164
    %458 = vmatprep.subr.mxu0 0.0
    %459 = vmatpush1.msra.mxu0 %v165
    %460 = vmatprep.subr.mxu0 0.0
    %461 = vmatpush1.msra.mxu0 %v166
    %462 = vmatprep.subr.mxu0 0.0
    %463 = vmatpush1.msra.mxu0 %v167
    %464 = vmatprep.subr.mxu0 0.0
    %465 = vmatpush1.msra.mxu0 %v168
    %466 = vmatprep.subr.mxu0 0.0
    %467 = vmatpush1.msra.mxu0 %v169
    %468 = vmatprep.subr.mxu0 0.0
    %469 = vmatpush1.msra.mxu0 %v170
    %470 = vmatprep.subr.mxu0 0.0
    %471 = vmatpush1.msra.mxu0 %v171
    %472 = vmatprep.subr.mxu0 0.0
    %473 = vmatpush1.msra.mxu0 %v172
    %474 = vmatprep.subr.mxu0 0.0
    %475 = vmatpush1.msra.mxu0 %v173
    %476 = vmatprep.subr.mxu0 0.0
    %477 = vmatpush1.msra.mxu0 %v174
    %478 = vmatprep.subr.mxu0 0.0
    %479 = vmatpush1.msra.mxu0 %v175
    %480 = vmatprep.subr.mxu0 0.0
    %481 = vmatpush1.msra.mxu0 %v176
    %482 = vmatprep.subr.mxu0 0.0
    %483 = vmatpush1.msra.mxu0 %v177
    %484 = vmatprep.subr.mxu0 0.0
    %485 = vmatpush1.msra.mxu0 %v178
    %486 = vmatprep.subr.mxu0 0.0
    %487 = vmatpush1.msra.mxu0 %v179
    %488 = vmatprep.subr.mxu0 0.0
    %489 = vmatpush1.msra.mxu0 %v180
    %490 = vmatprep.subr.mxu0 0.0
    %491 = vmatpush1.msra.mxu0 %v181
    %492 = vmatprep.subr.mxu0 0.0
    %493 = vmatpush1.msra.mxu0 %v182
    %494 = vmatprep.subr.mxu0 0.0
    %495 = vmatpush1.msra.mxu0 %v183
    %496 = vmatprep.subr.mxu0 0.0
    %497 = vmatpush1.msra.mxu0 %v184
    %498 = vmatprep.mubr.f32.mxu0 %v54
    %499 = vmatmul.mubr.f32.gmra.mrb[0].mxu0 %v53
    %v500 = vpop.f32.mrb[0].mxu0
    %v501 = vadd.f32 %v431, %v500
    %v502 = vpop.f32.mrb[0].mxu0
    %503 = vdwg.mxu0
    %504 = vmatprep.subr.mxu0 0.0
    %505 = vmatpush1.msra.mxu0 %v185
    %506 = vmatprep.subr.mxu0 0.0
    %507 = vmatpush1.msra.mxu0 %v186
    %508 = vmatprep.subr.mxu0 0.0
    %509 = vmatpush1.msra.mxu0 %v187
    %510 = vmatprep.subr.mxu0 0.0
    %511 = vmatpush1.msra.mxu0 %v188
    %512 = vmatprep.subr.mxu0 0.0
    %513 = vmatpush1.msra.mxu0 %v189
    %514 = vmatprep.subr.mxu0 0.0
    %515 = vmatpush1.msra.mxu0 %v190
    %516 = vmatprep.subr.mxu0 0.0
    %517 = vmatpush1.msra.mxu0 %v191
    %518 = vmatprep.subr.mxu0 0.0
    %519 = vmatpush1.msra.mxu0 %v192
    %520 = vmatprep.subr.mxu0 0.0
    %521 = vmatpush1.msra.mxu0 %v193
    %522 = vmatprep.subr.mxu0 0.0
    %523 = vmatpush1.msra.mxu0 %v194
    %524 = vmatprep.subr.mxu0 0.0
    %525 = vmatpush1.msra.mxu0 %v195
    %526 = vmatprep.subr.mxu0 0.0
    %527 = vmatpush1.msra.mxu0 %v196
    %528 = vmatprep.subr.mxu0 0.0
    %529 = vmatpush1.msra.mxu0 %v197
    %530 = vmatprep.subr.mxu0 0.0
    %531 = vmatpush1.msra.mxu0 %v198
    %532 = vmatprep.subr.mxu0 0.0
    %533 = vmatpush1.msra.mxu0 %v199
    %534 = vmatprep.subr.mxu0 0.0
    %535 = vmatpush1.msra.mxu0 %v200
    %536 = vmatprep.subr.mxu0 0.0
    %537 = vmatpush1.msra.mxu0 %v201
    %538 = vmatprep.subr.mxu0 0.0
    %539 = vmatpush1.msra.mxu0 %v202
    %540 = vmatprep.subr.mxu0 0.0
    %541 = vmatpush1.msra.mxu0 %v203
    %542 = vmatprep.subr.mxu0 0.0
    %543 = vmatpush1.msra.mxu0 %v204
    %544 = vmatprep.subr.mxu0 0.0
    %545 = vmatpush1.msra.mxu0 %v205
    %546 = vmatprep.subr.mxu0 0.0
    %547 = vmatpush1.msra.mxu0 %v206
    %548 = vmatprep.subr.mxu0 0.0
    %549 = vmatpush1.msra.mxu0 %v207
    %550 = vmatprep.subr.mxu0 0.0
    %551 = vmatpush1.msra.mxu0 %v208
    %552 = vmatprep.subr.mxu0 0.0
    %553 = vmatpush1.msra.mxu0 %v209
    %554 = vmatprep.subr.mxu0 0.0
    %555 = vmatpush1.msra.mxu0 %v210
    %556 = vmatprep.subr.mxu0 0.0
    %557 = vmatpush1.msra.mxu0 %v211
    %558 = vmatprep.subr.mxu0 0.0
    %559 = vmatpush1.msra.mxu0 %v212
    %560 = vmatprep.subr.mxu0 0.0
    %561 = vmatpush1.msra.mxu0 %v213
    %562 = vmatprep.subr.mxu0 0.0
    %563 = vmatpush1.msra.mxu0 %v214
    %564 = vmatprep.subr.mxu0 0.0
    %565 = vmatpush1.msra.mxu0 %v215
    %566 = vmatprep.subr.mxu0 0.0
    %567 = vmatpush1.msra.mxu0 %v216
    %568 = vmatprep.mubr.f32.mxu0 %v56
    %569 = vmatmul.mubr.f32.gmra.mrb[0].mxu0 %v55
    %v570 = vpop.f32.mrb[0].mxu0
    %v571 = vadd.f32 %v501, %v570
    %v572 = vpop.f32.mrb[0].mxu0
    %573 = vdwg.mxu0
    %v574 = vmax.f32 %v571, 0.0
    %v575 = vld [vmem:[%s3] sm:$0xff]
    %v576 = vld [vmem:[%s3 + $0x8] sm:$0xff]
    %v577 = vld [vmem:[%s3 + $0x10] sm:$0xff]
    %v578 = vld [vmem:[%s3 + $0x18] sm:$0xff]
    %v579 = vld [vmem:[%s3 + $0x20] sm:$0xff]
    %v580 = vld [vmem:[%s3 + $0x28] sm:$0xff]
    %v581 = vld [vmem:[%s3 + $0x30] sm:$0xff]
    %v582 = vld [vmem:[%s3 + $0x38] sm:$0xff]
    %v583 = vld [vmem:[%s3 + $0x40] sm:$0xff]
    %v584 = vld [vmem:[%s3 + $0x48] sm:$0xff]
    %v585 = vld [vmem:[%s3 + $0x50] sm:$0xff]
    %v586 = vld [vmem:[%s3 + $0x58] sm:$0xff]
    %v587 = vld [vmem:[%s3 + $0x60] sm:$0xff]
    %v588 = vld [vmem:[%s3 + $0x68] sm:$0xff]
    %v589 = vld [vmem:[%s3 + $0x70] sm:$0xff]
    %v590 = vld [vmem:[%s3 + $0x78] sm:$0xff]
    %v591 = vld [vmem:[%s4] sm:$0x1]
    %v593 = vlaneseq
    %v594 = vshrl.u32 %v593, 7
    %v595 = vsub.s32 0, %v594
    %v596 = vrot.slane %v591, %v595
    %598 = vmatprep.subr.mxu0 0.0
    %599 = vmatpush1.msra.mxu0 %v575
    %600 = vmatprep.subr.mxu0 0.0
    %601 = vmatpush1.msra.mxu0 %v576
    %602 = vmatprep.subr.mxu0 0.0
    %603 = vmatpush1.msra.mxu0 %v577
    %604 = vmatprep.subr.mxu0 0.0
    %605 = vmatpush1.msra.mxu0 %v578
    %606 = vmatprep.subr.mxu0 0.0
    %607 = vmatpush1.msra.mxu0 %v579
    %608 = vmatprep.subr.mxu0 0.0
    %609 = vmatpush1.msra.mxu0 %v580
    %610 = vmatprep.subr.mxu0 0.0
    %611 = vmatpush1.msra.mxu0 %v581
    %612 = vmatprep.subr.mxu0 0.0
    %613 = vmatpush1.msra.mxu0 %v582
    %614 = vmatprep.subr.mxu0 0.0
    %615 = vmatpush1.msra.mxu0 %v583
    %616 = vmatprep.subr.mxu0 0.0
    %617 = vmatpush1.msra.mxu0 %v584
    %618 = vmatprep.subr.mxu0 0.0
    %619 = vmatpush1.msra.mxu0 %v585
    %620 = vmatprep.subr.mxu0 0.0
    %621 = vmatpush1.msra.mxu0 %v586
    %622 = vmatprep.subr.mxu0 0.0
    %623 = vmatpush1.msra.mxu0 %v587
    %624 = vmatprep.subr.mxu0 0.0
    %625 = vmatpush1.msra.mxu0 %v588
    %626 = vmatprep.subr.mxu0 0.0
    %627 = vmatpush1.msra.mxu0 %v589
    %628 = vmatprep.subr.mxu0 0.0
    %629 = vmatpush1.msra.mxu0 %v590
    %630 = vmatprep.subr.mxu0 0.0
    %631 = vmatpush1.msra.mxu0 0.0
    %632 = vmatprep.subr.mxu0 0.0
    %633 = vmatpush1.msra.mxu0 0.0
    %634 = vmatprep.subr.mxu0 0.0
    %635 = vmatpush1.msra.mxu0 0.0
    %636 = vmatprep.subr.mxu0 0.0
    %637 = vmatpush1.msra.mxu0 0.0
    %638 = vmatprep.subr.mxu0 0.0
    %639 = vmatpush1.msra.mxu0 0.0
    %640 = vmatprep.subr.mxu0 0.0
    %641 = vmatpush1.msra.mxu0 0.0
    %642 = vmatprep.subr.mxu0 0.0
    %643 = vmatpush1.msra.mxu0 0.0
    %644 = vmatprep.subr.mxu0 0.0
    %645 = vmatpush1.msra.mxu0 0.0
    %646 = vmatprep.subr.mxu0 0.0
    %647 = vmatpush1.msra.mxu0 0.0
    %648 = vmatprep.subr.mxu0 0.0
    %649 = vmatpush1.msra.mxu0 0.0
    %650 = vmatprep.subr.mxu0 0.0
    %651 = vmatpush1.msra.mxu0 0.0
    %652 = vmatprep.subr.mxu0 0.0
    %653 = vmatpush1.msra.mxu0 0.0
    %654 = vmatprep.subr.mxu0 0.0
    %655 = vmatpush1.msra.mxu0 0.0
    %656 = vmatprep.subr.mxu0 0.0
    %657 = vmatpush1.msra.mxu0 0.0
    %658 = vmatprep.subr.mxu0 0.0
    %659 = vmatpush1.msra.mxu0 0.0
    %660 = vmatprep.subr.mxu0 0.0
    %661 = vmatpush1.msra.mxu0 0.0
    %662 = vmatprep.mubr.f32.mxu0 0.0
    %663 = vmatmul.mubr.f32.gmra.mrb[0].mxu0 %v574
    %v664 = vpop.f32.mrb[0].mxu0
    %v665 = vadd.f32 %v596, %v664
    %v666 = vpop.f32.mrb[0].mxu0
    %667 = vdwg.mxu0
    %v668 = vmax.f32 %v665, 0.0
    %v669 = vld [vmem:[%s5] sm:$0xff]
    %v670 = vld [vmem:[%s5 + $0x8] sm:$0xff]
    %v671 = vld [vmem:[%s5 + $0x10] sm:$0xff]
    %v672 = vld [vmem:[%s5 + $0x18] sm:$0xff]
    %v673 = vld [vmem:[%s5 + $0x20] sm:$0xff]
    %v674 = vld [vmem:[%s5 + $0x28] sm:$0xff]
    %v675 = vld [vmem:[%s5 + $0x30] sm:$0xff]
    %v676 = vld [vmem:[%s5 + $0x38] sm:$0xff]
    %v677 = vld [vmem:[%s6] sm:$0x1]
    %v679 = vlaneseq
    %v680 = vshrl.u32 %v679, 7
    %v681 = vsub.s32 0, %v680
    %v682 = vrot.slane %v677, %v681
    %vm684 = vcmask 523264
    %v686 = vsel %vm684, %v668, 0
    %688 = vmatprep.subr.mxu0 0.0
    %689 = vmatpush1.msra.mxu0 %v669
    %690 = vmatprep.subr.mxu0 0.0
    %691 = vmatpush1.msra.mxu0 %v670
    %692 = vmatprep.subr.mxu0 0.0
    %693 = vmatpush1.msra.mxu0 %v671
    %694 = vmatprep.subr.mxu0 0.0
    %695 = vmatpush1.msra.mxu0 %v672
    %696 = vmatprep.subr.mxu0 0.0
    %697 = vmatpush1.msra.mxu0 %v673
    %698 = vmatprep.subr.mxu0 0.0
    %699 = vmatpush1.msra.mxu0 %v674
    %700 = vmatprep.subr.mxu0 0.0
    %701 = vmatpush1.msra.mxu0 %v675
    %702 = vmatprep.subr.mxu0 0.0
    %703 = vmatpush1.msra.mxu0 %v676
    %704 = vmatprep.subr.mxu0 0.0
    %705 = vmatpush1.msra.mxu0 0.0
    %706 = vmatprep.subr.mxu0 0.0
    %707 = vmatpush1.msra.mxu0 0.0
    %708 = vmatprep.subr.mxu0 0.0
    %709 = vmatpush1.msra.mxu0 0.0
    %710 = vmatprep.subr.mxu0 0.0
    %711 = vmatpush1.msra.mxu0 0.0
    %712 = vmatprep.subr.mxu0 0.0
    %713 = vmatpush1.msra.mxu0 0.0
    %714 = vmatprep.subr.mxu0 0.0
    %715 = vmatpush1.msra.mxu0 0.0
    %716 = vmatprep.subr.mxu0 0.0
    %717 = vmatpush1.msra.mxu0 0.0
    %718 = vmatprep.subr.mxu0 0.0
    %719 = vmatpush1.msra.mxu0 0.0
    %720 = vmatprep.subr.mxu0 0.0
    %721 = vmatpush1.msra.mxu0 0.0
    %722 = vmatprep.subr.mxu0 0.0
    %723 = vmatpush1.msra.mxu0 0.0
    %724 = vmatprep.subr.mxu0 0.0
    %725 = vmatpush1.msra.mxu0 0.0
    %726 = vmatprep.subr.mxu0 0.0
    %727 = vmatpush1.msra.mxu0 0.0
    %728 = vmatprep.subr.mxu0 0.0
    %729 = vmatpush1.msra.mxu0 0.0
    %730 = vmatprep.subr.mxu0 0.0
    %731 = vmatpush1.msra.mxu0 0.0
    %732 = vmatprep.subr.mxu0 0.0
    %733 = vmatpush1.msra.mxu0 0.0
    %734 = vmatprep.subr.mxu0 0.0
    %735 = vmatpush1.msra.mxu0 0.0
    %736 = vmatprep.subr.mxu0 0.0
    %737 = vmatpush1.msra.mxu0 0.0
    %738 = vmatprep.subr.mxu0 0.0
    %739 = vmatpush1.msra.mxu0 0.0
    %740 = vmatprep.subr.mxu0 0.0
    %741 = vmatpush1.msra.mxu0 0.0
    %742 = vmatprep.subr.mxu0 0.0
    %743 = vmatpush1.msra.mxu0 0.0
    %744 = vmatprep.subr.mxu0 0.0
    %745 = vmatpush1.msra.mxu0 0.0
    %746 = vmatprep.subr.mxu0 0.0
    %747 = vmatpush1.msra.mxu0 0.0
    %748 = vmatprep.subr.mxu0 0.0
    %749 = vmatpush1.msra.mxu0 0.0
    %750 = vmatprep.subr.mxu0 0.0
    %751 = vmatpush1.msra.mxu0 0.0
    %752 = vmatprep.mubr.f32.mxu0 0.0
    %753 = vmatmul.mubr.f32.gmra.mrb[0].mxu0 %v686
    %v754 = vpop.f32.mrb[0].mxu0
    %v755 = vadd.f32 %v682, %v754
    %v756 = vpop.f32.mrb[0].mxu0
    %757 = vdwg.mxu0
    %v758 = vmax.f32 %v755, 0.0
    %v759 = vld [vmem:[%s7] sm:$0xff]
    %v760 = vld [vmem:[%s7 + $0x8] sm:$0xff]
    %v761 = vld [vmem:[%s7 + $0x10] sm:$0xff]
    %v762 = vld [vmem:[%s7 + $0x18] sm:$0xff]
    %v763 = vld [vmem:[%s8] sm:$0x1]
    %v765 = vlaneseq
    %v766 = vshrl.u32 %v765, 7
    %v767 = vsub.s32 0, %v766
    %v768 = vrot.slane %v763, %v767
    %vm770 = vcmask 261120
    %v772 = vsel %vm770, %v758, 0
    %774 = vmatprep.subr.mxu0 0.0
    %775 = vmatpush1.msra.mxu0 %v759
    %776 = vmatprep.subr.mxu0 0.0
    %777 = vmatpush1.msra.mxu0 %v760
    %778 = vmatprep.subr.mxu0 0.0
    %779 = vmatpush1.msra.mxu0 %v761
    %780 = vmatprep.subr.mxu0 0.0
    %781 = vmatpush1.msra.mxu0 %v762
    %782 = vmatprep.subr.mxu0 0.0
    %783 = vmatpush1.msra.mxu0 0.0
    %784 = vmatprep.subr.mxu0 0.0
    %785 = vmatpush1.msra.mxu0 0.0
    %786 = vmatprep.subr.mxu0 0.0
    %787 = vmatpush1.msra.mxu0 0.0
    %788 = vmatprep.subr.mxu0 0.0
    %789 = vmatpush1.msra.mxu0 0.0
    %790 = vmatprep.subr.mxu0 0.0
    %791 = vmatpush1.msra.mxu0 0.0
    %792 = vmatprep.subr.mxu0 0.0
    %793 = vmatpush1.msra.mxu0 0.0
    %794 = vmatprep.subr.mxu0 0.0
    %795 = vmatpush1.msra.mxu0 0.0
    %796 = vmatprep.subr.mxu0 0.0
    %797 = vmatpush1.msra.mxu0 0.0
    %798 = vmatprep.subr.mxu0 0.0
    %799 = vmatpush1.msra.mxu0 0.0
    %800 = vmatprep.subr.mxu0 0.0
    %801 = vmatpush1.msra.mxu0 0.0
    %802 = vmatprep.subr.mxu0 0.0
    %803 = vmatpush1.msra.mxu0 0.0
    %804 = vmatprep.subr.mxu0 0.0
    %805 = vmatpush1.msra.mxu0 0.0
    %806 = vmatprep.subr.mxu0 0.0
    %807 = vmatpush1.msra.mxu0 0.0
    %808 = vmatprep.subr.mxu0 0.0
    %809 = vmatpush1.msra.mxu0 0.0
    %810 = vmatprep.subr.mxu0 0.0
    %811 = vmatpush1.msra.mxu0 0.0
    %812 = vmatprep.subr.mxu0 0.0
    %813 = vmatpush1.msra.mxu0 0.0
    %814 = vmatprep.subr.mxu0 0.0
    %815 = vmatpush1.msra.mxu0 0.0
    %816 = vmatprep.subr.mxu0 0.0
    %817 = vmatpush1.msra.mxu0 0.0
    %818 = vmatprep.subr.mxu0 0.0
    %819 = vmatpush1.msra.mxu0 0.0
    %820 = vmatprep.subr.mxu0 0.0
    %821 = vmatpush1.msra.mxu0 0.0
    %822 = vmatprep.subr.mxu0 0.0
    %823 = vmatpush1.msra.mxu0 0.0
    %824 = vmatprep.subr.mxu0 0.0
    %825 = vmatpush1.msra.mxu0 0.0
    %826 = vmatprep.subr.mxu0 0.0
    %827 = vmatpush1.msra.mxu0 0.0
    %828 = vmatprep.subr.mxu0 0.0
    %829 = vmatpush1.msra.mxu0 0.0
    %830 = vmatprep.subr.mxu0 0.0
    %831 = vmatpush1.msra.mxu0 0.0
    %832 = vmatprep.subr.mxu0 0.0
    %833 = vmatpush1.msra.mxu0 0.0
    %834 = vmatprep.subr.mxu0 0.0
    %835 = vmatpush1.msra.mxu0 0.0
    %836 = vmatprep.subr.mxu0 0.0
    %837 = vmatpush1.msra.mxu0 0.0
    %838 = vmatprep.mubr.f32.mxu0 0.0
    %839 = vmatmul.mubr.f32.gmra.mrb[0].mxu0 %v772
    %v840 = vpop.f32.mrb[0].mxu0
    %v841 = vadd.f32 %v768, %v840
    %v842 = vpop.f32.mrb[0].mxu0
    %843 = vdwg.mxu0
    %844 = vst [vmem:[#allocation5] sm:$0xff] %v841
    // Predicated region
    $region42: #{tpu_custom_call.1} parent=1 // pred_check
      _
    $region43: #{tpu_custom_call.1} parent=1 // pred_check_branch
      %846 = sbr.rel (0) target = $region45
    $region44: #{tpu_custom_call.1} parent=1 // pred_region
      %s848 = ssub.s32 128, 128
      %849 = vsyncadd [#allocation4], %s848
      %s851 = sshll.u32 [#allocation5], 4
      %s852 = int_to_ptr.vmem [resolvable:$true] %s851
      %854 = dma.vmem_to_hbm [thread:$0]  %s852, 128, %s9, [#allocation4]
    $region45: #{tpu_custom_call.1} parent=1 // pred_fallthru
      _
    // Predicated region
    $region46: #{tpu_custom_call.1} parent=1 // pred_check
      _
    $region47: #{tpu_custom_call.1} parent=1 // pred_check_branch
      %856 = sbr.rel (0) target = $region49
    $region48: #{tpu_custom_call.1} parent=1 // pred_region
      %857 = dma.done [#allocation4], 128
    $region49: #{tpu_custom_call.1} parent=1 // pred_fallthru
      _
    %858 = vsyncpa [#allocation3], 1
    %859 = vsyncpa [#allocation4], 1

</llo_original>
